<compile_context>
chip_gen: v7x
topology: tpu7x:2x2x1
jax: 0.10.0
libtpu: 0.0.40
codegen_flags: <defaults>
</compile_context>

<pallas_src>
import jax
import jax.numpy as jnp
from jax.experimental import pallas as pl
from jax.experimental.pallas import tpu as pltpu


# ----------------------------------------------------------------------------
# Primary path: zero-traffic aliased identity (donated input).
# ----------------------------------------------------------------------------
def _alias_identity_kernel(x_hbm_ref, o_hbm_ref):
    # forward(x) = x.  The output HBM buffer aliases the input HBM buffer
    # (input_output_aliases={0: 0}), so nothing has to move: no DMA, no VMEM
    # staging, no grid.  The body is intentionally empty.
    del x_hbm_ref, o_hbm_ref


def _zero_copy_identity(x: jax.Array) -> jax.Array:
    return pl.pallas_call(
        _alias_identity_kernel,
        out_shape=jax.ShapeDtypeStruct(x.shape, x.dtype),
        in_specs=[pl.BlockSpec(memory_space=pl.ANY)],
        out_specs=pl.BlockSpec(memory_space=pl.ANY),
        input_output_aliases={0: 0},
        cost_estimate=pl.CostEstimate(flops=0, transcendentals=0, bytes_accessed=0),
        compiler_params=pltpu.CompilerParams(has_side_effects=True),
    )(x)


# Donating the argument lets XLA honor the alias in place (zero HBM traffic).
_zero_copy_jit = jax.jit(_zero_copy_identity, donate_argnums=0)


# ----------------------------------------------------------------------------
# Fallback path: pipelined lane-dense copy (no aliasing, no donation needed).
# ----------------------------------------------------------------------------
_MAX_BLOCK_BYTES = 8 * 1024 * 1024      # per-block cap (review: 6-8 MiB)
_VMEM_LIMIT_BYTES = 48 * 1024 * 1024    # covers 4x residency; <= v7x 64 MiB phys


def _copy_kernel(x_ref, o_ref):
    o_ref[...] = x_ref[...]


def _pick_lane_width(n):
    # Largest lane-dense width (multiple of the 128-lane vreg) dividing n.
    for w in (8192, 4096, 2048, 1024, 512, 256, 128):
        if n % w == 0:
            return w
    return None


def _tiled_copy(x: jax.Array) -> jax.Array:
    n = x.size
    itemsize = jnp.dtype(x.dtype).itemsize
    bytes_accessed = 2 * n * itemsize
    lane_w = _pick_lane_width(n)

    if lane_w is None:
        # Ragged tiny input: single full-extent block (exempt from (8,128)).
        flat = x.reshape(n)
        out = pl.pallas_call(
            _copy_kernel,
            out_shape=jax.ShapeDtypeStruct((n,), x.dtype),
            cost_estimate=pl.CostEstimate(
                flops=0, transcendentals=0, bytes_accessed=bytes_accessed),
        )(flat)
        return out.reshape(x.shape)

    rows = n // lane_w
    flat = x.reshape(rows, lane_w)

    # Dtype-aware sublane alignment: 8 rows (f32), 16 (bf16), 32 (int8/fp8).
    sub = 8 * max(1, 4 // itemsize)
    max_rows = max(1, _MAX_BLOCK_BYTES // (lane_w * itemsize))
    if rows <= max_rows:
        block_rows = rows                                  # full extent -> legal
    else:
        block_rows = max(sub, (max_rows // sub) * sub)
        # Prefer a block count that divides rows: no masked tail block.
        for cand in range(block_rows, sub - 1, -sub):
            if rows % cand == 0:
                block_rows = cand
                break

    grid = (pl.cdiv(rows, block_rows),)
    out = pl.pallas_call(
        _copy_kernel,
        out_shape=jax.ShapeDtypeStruct(flat.shape, flat.dtype),
        grid=grid,
        in_specs=[pl.BlockSpec((block_rows, lane_w), lambda i: (i, 0))],
        out_specs=pl.BlockSpec((block_rows, lane_w), lambda i: (i, 0)),
        cost_estimate=pl.CostEstimate(
            flops=0, transcendentals=0, bytes_accessed=bytes_accessed),
        compiler_params=pltpu.CompilerParams(
            dimension_semantics=("parallel",),
            vmem_limit_bytes=_VMEM_LIMIT_BYTES),
        # TODO(synk): on v7x, shard the row axis across both TensorCores
        # (pltpu.CORE_PARALLEL / pl.core_map) to drive both HBM ports.
    )(flat)
    return out.reshape(x.shape)


_tiled_copy_jit = jax.jit(_tiled_copy)


# ----------------------------------------------------------------------------
# Public wrapper.
# ----------------------------------------------------------------------------
_USE_FALLBACK = False


def cnn_forward(x: jax.Array) -> jax.Array:
    """Pallas implementation of CNN.forward (identity).

    Note: the fast path donates `x` (the returned array reuses its buffer),
    mirroring PyTorch's `return x` which hands back the same tensor.
    """
    global _USE_FALLBACK
    if not _USE_FALLBACK:
        try:
            return _zero_copy_jit(x)
        except Exception:
            # Robustness only: fall back to the pipelined copy kernel.
            _USE_FALLBACK = True
    return _tiled_copy_jit(x)


if __name__ == "__main__":
    key = jax.random.PRNGKey(0)
    shape = (2, 4, 16, 16)  # NCHW input consistent with a CNN-style module
    x = jax.random.normal(key, shape, dtype=jnp.float32)
    # Same key -> identical values; lets us verify even though x is donated.
    x_expected = jax.random.normal(key, shape, dtype=jnp.float32)

    y = cnn_forward(x)
    jax.block_until_ready(y)

    assert y.shape == shape and y.dtype == jnp.float32
    assert bool(jnp.all(y == x_expected))
    print("KERNEL_OK")
</pallas_src>

<mosaic_0001>
module attributes {stable_mosaic.version = 11 : i64} {
  func.func @_alias_identity_kernel(%arg0: memref<2x4x16x16xf32, #tpu.memory_space<any>>, %arg1: memref<2x4x16x16xf32, #tpu.memory_space<any>>) attributes {dimension_semantics = [], scalar_prefetch = 0 : i64, scratch_operands = 0 : i64, tpu.core_type = #tpu.core_type<tc>} {
    return
  }
}

module attributes {stable_mosaic.version = 11 : i64} {
  func.func @_copy_kernel(%arg0: i32, %arg1: memref<1x2048xf32, #tpu.memory_space<vmem>>, %arg2: memref<1x2048xf32, #tpu.memory_space<vmem>>) attributes {dimension_semantics = [#tpu.dimension_semantics<parallel>], iteration_bounds = array<i64: 1>, scalar_prefetch = 0 : i64, scratch_operands = 0 : i64, tpu.core_type = #tpu.core_type<tc>, window_params = [{transform_indices = @transform_0, window_bounds = array<i64: 1, 2048>}, {transform_indices = @transform_1, window_bounds = array<i64: 1, 2048>}]} {
    %c0 = arith.constant 0 : index
    %c0_0 = arith.constant 0 : index
    %0 = vector.load %arg1[%c0, %c0_0] : memref<1x2048xf32, #tpu.memory_space<vmem>>, vector<1x2048xf32>
    %c0_1 = arith.constant 0 : index
    %c0_2 = arith.constant 0 : index
    %1 = vector.load %arg2[%c0_1, %c0_2] : memref<1x2048xf32, #tpu.memory_space<vmem>>, vector<1x2048xf32>
    tpu.vector_store %arg2[%c0_1, %c0_2], %0 {strides = array<i32>} : memref<1x2048xf32, #tpu.memory_space<vmem>>, vector<1x2048xf32>,
    return
  }
  func.func @transform_0(%arg0: i32) -> (i32, i32) {
    %c0_i32 = arith.constant 0 : i32
    %c0_i32_0 = arith.constant 0 : i32
    return %arg0, %c0_i32 : i32, i32
  }
  func.func @transform_1(%arg0: i32) -> (i32, i32) {
    %c0_i32 = arith.constant 0 : i32
    %c0_i32_0 = arith.constant 0 : i32
    return %arg0, %c0_i32 : i32, i32
  }
}

</mosaic_0001>

<llo_original>
// kernel: _zero_copy_identity.1
$region0: #{_zero_copy_identity.1}
  #allocation0 [shape = 'u32[]', space=smem, size = 0x4, offset = 0x4, fixed_abs, tag = 'smem constant byte address 0x4 - core index']
  #allocation1 [shape = 'u32[144,128]{1,0:T(1,128)}', space=vmem, size = 0x12000, scoped, tag = 'internal scratch']
  %s0 = inlined_call_operand.hbm [shape: f32[2,4,16,16], index: 0, kind: input, shape index: {}, may-alias: {0,1}]
  %s1 = inlined_call_operand.hbm [shape: f32[2,4,16,16], index: 1, kind: output, shape index: {}, may-alias: {0,1}]
  %s2 = sld [smem:[#allocation0]]
  $region2: #{_zero_copy_identity.1} parent=0
    _
  %s4 = ssub.s32 1, %s2
  %s5 = scalar_select 0, %s4, %s2

// kernel: _tiled_copy.1
$region0: #{_tiled_copy.1}
  #allocation0 [shape = 'u32[]', space=smem, size = 0x4, offset = 0x4, fixed_abs, tag = 'smem constant byte address 0x4 - core index']
  #allocation1 [shape = 'u32[144,128]{1,0:T(1,128)}', space=vmem, size = 0x12000, scoped, tag = 'internal scratch']
  %s0 = inlined_call_operand.vmem [shape: f32[1,2048], index: 0, kind: input, shape index: {}]
  %s1 = inlined_call_operand.vmem [shape: f32[1,2048], index: 1, kind: output, shape index: {}]
  %s2 = sld [smem:[#allocation0]]
  $region14: #{_tiled_copy.1} parent=0
    _
  %s4 = ssub.s32 1, %s2
  %s5 = scalar_select 0, %s4, %s2
  // Predicated region
  $region2: #{_tiled_copy.1} parent=0 // pred_check
    _
  $region3: #{_tiled_copy.1} parent=0 // pred_check_branch
    %7 = sbr.rel (0) target = $region5
  $region4: #{_tiled_copy.1} parent=0 // pred_region
    _
  $region5: #{_tiled_copy.1} parent=0 // pred_fallthru
    _
  %v8 = vld [vmem:[%s0] sm:$0xff]
  %v9 = vld [vmem:[%s0 + $0x8] sm:$0xff]
  %10 = vst [vmem:[%s1] sm:$0xff] %v8
  %11 = vst [vmem:[%s1 + $0x8] sm:$0xff] %v9
  // Predicated region
  $region6: #{_tiled_copy.1} parent=0 // pred_check
    _
  $region7: #{_tiled_copy.1} parent=0 // pred_check_branch
    %13 = sbr.rel (0) target = $region9
  $region8: #{_tiled_copy.1} parent=0 // pred_region
    _
  $region9: #{_tiled_copy.1} parent=0 // pred_fallthru
    _
  // Predicated region
  $region10: #{_tiled_copy.1} parent=0 // pred_check
    _
  $region11: #{_tiled_copy.1} parent=0 // pred_check_branch
    %15 = sbr.rel (0) target = $region13
  $region12: #{_tiled_copy.1} parent=0 // pred_region
    _
  $region13: #{_tiled_copy.1} parent=0 // pred_fallthru
    _

</llo_original>
